<compile_context>
chip_gen: v6e
topology: v6e:2x2x1
jax: 0.10.0
libtpu: 0.0.40
codegen_flags: <defaults>
</compile_context>

<pallas_src>
import jax
import jax.numpy as jnp
from jax.experimental import pallas as pl
from jax.experimental.pallas import tpu as pltpu

DROPOUT_P = 0.1
BN_EPS = 1e-5
_DROP_THRESHOLD = int(DROPOUT_P * 4294967296.0)  # bits < threshold  =>  drop (P = p)
_GOLDEN = 0x9E3779B9


def _hash_u32(x):
    """lowbias32 finalizer: 5 cheap VPU integer ops, good avalanche for a dropout mask."""
    x = x ^ (x >> 16)
    x = x * jnp.uint32(0x7FEB352D)
    x = x ^ (x >> 15)
    x = x * jnp.uint32(0x846CA68B)
    x = x ^ (x >> 16)
    return x


def linear_block_kernel(seed_ref, x_ref, w_ref, b_ref, gamma_ref, beta_ref, o_ref):
    n, tile_f = o_ref.shape

    # ---- Linear (MXU): x (N, K) contracted with weight tile (TILE_F, K) over K ----
    # (no host-side transpose; the MXU consumes the transposed operand directly)
    y = jax.lax.dot_general(
        x_ref[...], w_ref[...],
        dimension_numbers=(((1,), (1,)), ((), ())),
        preferred_element_type=jnp.float32,
    )
    y = y + b_ref[...]                      # (N, TILE_F) + (1, TILE_F)

    # ---- ReLU (VPU) ----
    y = jnp.maximum(y, 0.0)

    # ---- Dropout (training): stateless hash keyed on (seed, global element id) ----
    f_tile = jax.lax.convert_element_type(pl.program_id(0), jnp.uint32)
    seed = jax.lax.convert_element_type(seed_ref[0], jnp.uint32)
    rows = jax.lax.broadcasted_iota(jnp.int32, (n, tile_f), 0).astype(jnp.uint32)
    cols = jax.lax.broadcasted_iota(jnp.int32, (n, tile_f), 1).astype(jnp.uint32)
    gcol = cols + jnp.uint32(tile_f) * f_tile          # global feature index
    elem_id = gcol * jnp.uint32(n) + rows              # unique per output element
    bits = _hash_u32(elem_id + seed * jnp.uint32(_GOLDEN))
    keep = bits >= jnp.uint32(_DROP_THRESHOLD)         # P(keep) = 1 - p
    # NOTE: the 1/(1-p) inverted-dropout rescale is intentionally omitted — the
    # BatchNorm below is invariant to a uniform scale of y.
    y = jnp.where(keep, y, 0.0)

    # ---- BatchNorm1d (training: biased batch stats), one pass + folded affine ----
    inv_n = 1.0 / n
    s1 = jnp.sum(y, axis=0, keepdims=True)             # (1, TILE_F)
    s2 = jnp.sum(y * y, axis=0, keepdims=True)         # (1, TILE_F)
    mean = s1 * inv_n
    var = jnp.maximum(s2 * inv_n - mean * mean, 0.0)   # guard tiny negative cancellation
    a = gamma_ref[...] * jax.lax.rsqrt(var + BN_EPS)   # (1, TILE_F)
    c = beta_ref[...] - mean * a                       # (1, TILE_F)
    o_ref[...] = y * a + c


def linear_block(x, weight, bias, gamma, beta, seed, *, tile_f=128):
    """x: (N, in_feats) f32, weight: (out_feats, in_feats) f32 (PyTorch layout, no transpose)."""
    n, in_feats = x.shape
    out_feats, in_feats_w = weight.shape
    assert in_feats == in_feats_w
    assert out_feats % tile_f == 0, "pad out_feats / pick tile_f as a multiple of 128"

    b_row = bias.reshape(1, out_feats)
    g_row = gamma.reshape(1, out_feats)
    bt_row = beta.reshape(1, out_feats)
    seed_arr = jnp.asarray([seed], dtype=jnp.int32)

    num_f_tiles = out_feats // tile_f
    # NOTE: for very large batches (N*tile_f*4B beyond the VMEM budget, hits v7x's
    # 64 MiB first) switch to a two-pass BN over an "arbitrary" N grid axis; for very
    # large tiles also raise pltpu.CompilerParams(vmem_limit_bytes=...).

    return pl.pallas_call(
        linear_block_kernel,
        out_shape=jax.ShapeDtypeStruct((n, out_feats), jnp.float32),
        grid=(num_f_tiles,),
        in_specs=[
            pl.BlockSpec((1,), lambda f: (0,),
                         memory_space=pltpu.MemorySpace.SMEM),      # seed (scalar)
            pl.BlockSpec((n, in_feats), lambda f: (0, 0)),          # x: resident across tiles
            pl.BlockSpec((tile_f, in_feats), lambda f: (f, 0)),     # weight tile (PyTorch layout)
            pl.BlockSpec((1, tile_f), lambda f: (0, f)),            # bias row
            pl.BlockSpec((1, tile_f), lambda f: (0, f)),            # gamma row
            pl.BlockSpec((1, tile_f), lambda f: (0, f)),            # beta row
        ],
        out_specs=pl.BlockSpec((n, tile_f), lambda f: (0, f)),
        compiler_params=pltpu.CompilerParams(
            dimension_semantics=("parallel",),   # feature tiles are independent (BN is per-feature)
        ),
    )(seed_arr, x, weight, b_row, g_row, bt_row)


if __name__ == "__main__":
    # Small shapes consistent with an MLP block; out_feats is a 128-multiple so the
    # output stores are lane-dense, and 2 feature tiles exercise the grid.
    N, IN_FEATS, OUT_FEATS = 16, 64, 256

    key = jax.random.PRNGKey(0)
    kx, kw, kb = jax.random.split(key, 3)

    x = jax.random.normal(kx, (N, IN_FEATS), dtype=jnp.float32)

    # Deterministic parameter init (nn.Linear-style uniform bound = 1/sqrt(in_feats)).
    bound = 1.0 / (IN_FEATS ** 0.5)
    weight = jax.random.uniform(kw, (OUT_FEATS, IN_FEATS), jnp.float32, -bound, bound)
    bias = jax.random.uniform(kb, (OUT_FEATS,), jnp.float32, -bound, bound)
    gamma = jnp.ones((OUT_FEATS,), jnp.float32)   # BatchNorm1d default weight
    beta = jnp.zeros((OUT_FEATS,), jnp.float32)   # BatchNorm1d default bias

    out = linear_block(x, weight, bias, gamma, beta, seed=0)
    out = jax.block_until_ready(out)

    assert out.shape == (N, OUT_FEATS)
    assert bool(jnp.all(jnp.isfinite(out)))
    # Training-mode BatchNorm property: per-feature batch mean == beta (= 0 here).
    assert float(jnp.max(jnp.abs(jnp.mean(out, axis=0)))) < 1e-3
    print("KERNEL_OK")
</pallas_src>

<mosaic_0001>
module attributes {stable_mosaic.version = 11 : i64} {
  func.func @linear_block_kernel(%arg0: i32, %arg1: memref<1xi32, #tpu.memory_space<smem>>, %arg2: memref<16x64xf32, #tpu.memory_space<vmem>>, %arg3: memref<128x64xf32, #tpu.memory_space<vmem>>, %arg4: memref<1x128xf32, #tpu.memory_space<vmem>>, %arg5: memref<1x128xf32, #tpu.memory_space<vmem>>, %arg6: memref<1x128xf32, #tpu.memory_space<vmem>>, %arg7: memref<16x128xf32, #tpu.memory_space<vmem>>) attributes {dimension_semantics = [#tpu.dimension_semantics<parallel>], iteration_bounds = array<i64: 2>, scalar_prefetch = 0 : i64, scratch_operands = 0 : i64, tpu.core_type = #tpu.core_type<tc>, window_params = [{transform_indices = @transform_0, window_bounds = array<i64: 1>}, {pipeline_mode = #tpu.pipeline_mode<synchronous>, transform_indices = @transform_1, window_bounds = array<i64: 16, 64>}, {transform_indices = @transform_2, window_bounds = array<i64: 128, 64>}, {transform_indices = @transform_3, window_bounds = array<i64: 1, 128>}, {transform_indices = @transform_4, window_bounds = array<i64: 1, 128>}, {transform_indices = @transform_5, window_bounds = array<i64: 1, 128>}, {transform_indices = @transform_6, window_bounds = array<i64: 16, 128>}]} {
    %c0 = arith.constant 0 : index
    %c0_0 = arith.constant 0 : index
    %0 = vector.load %arg2[%c0, %c0_0] : memref<16x64xf32, #tpu.memory_space<vmem>>, vector<16x64xf32>
    %c0_1 = arith.constant 0 : index
    %c0_2 = arith.constant 0 : index
    %1 = vector.load %arg3[%c0_1, %c0_2] : memref<128x64xf32, #tpu.memory_space<vmem>>, vector<128x64xf32>
    %cst = arith.constant dense<0.000000e+00> : vector<16x128xf32>
    %2 = tpu.matmul %0, %1, %cst {dimension_numbers = #tpu.dot_dimension_numbers<[1], [1], [0], [0], [0, 0, 1, 0], [], []>} : vector<16x64xf32>, vector<128x64xf32>, vector<16x128xf32> -> vector<16x128xf32>
    %c0_3 = arith.constant 0 : index
    %c0_4 = arith.constant 0 : index
    %3 = vector.load %arg4[%c0_3, %c0_4] : memref<1x128xf32, #tpu.memory_space<vmem>>, vector<1x128xf32>
    %4 = vector.broadcast %3 : vector<1x128xf32> to vector<16x128xf32>
    %5 = arith.addf %2, %4 : vector<16x128xf32>
    %cst_5 = arith.constant 0.000000e+00 : f32
    %6 = vector.broadcast %cst_5 : f32 to vector<16x128xf32>
    %7 = arith.maximumf %5, %6 : vector<16x128xf32>
    %c0_6 = arith.constant 0 : index
    %8 = memref.load %arg1[%c0_6] : memref<1xi32, #tpu.memory_space<smem>>
    %9 = tpu.iota {dimensions = array<i32: 0>} : vector<16x128xi32>
    %10 = tpu.iota {dimensions = array<i32: 1>} : vector<16x128xi32>
    %c128_i32 = arith.constant 128 : i32
    %11 = arith.muli %c128_i32, %arg0 : i32
    %12 = vector.broadcast %11 : i32 to vector<16x128xi32>
    %13 = arith.addi %10, %12 : vector<16x128xi32>
    %c16_i32 = arith.constant 16 : i32
    %14 = vector.broadcast %c16_i32 : i32 to vector<16x128xi32>
    %15 = arith.muli %13, %14 : vector<16x128xi32>
    %16 = arith.addi %15, %9 : vector<16x128xi32>
    %c-1640531527_i32 = arith.constant -1640531527 : i32
    %17 = arith.muli %8, %c-1640531527_i32 : i32
    %18 = vector.broadcast %17 : i32 to vector<16x128xi32>
    %19 = arith.addi %16, %18 : vector<16x128xi32>
    %c16_i32_7 = arith.constant 16 : i32
    %20 = vector.broadcast %c16_i32_7 : i32 to vector<16x128xi32>
    %21 = arith.shrui %19, %20 : vector<16x128xi32>
    %22 = arith.xori %19, %21 : vector<16x128xi32>
    %c2146121005_i32 = arith.constant 2146121005 : i32
    %23 = vector.broadcast %c2146121005_i32 : i32 to vector<16x128xi32>
    %24 = arith.muli %22, %23 : vector<16x128xi32>
    %c15_i32 = arith.constant 15 : i32
    %25 = vector.broadcast %c15_i32 : i32 to vector<16x128xi32>
    %26 = arith.shrui %24, %25 : vector<16x128xi32>
    %27 = arith.xori %24, %26 : vector<16x128xi32>
    %c-2073254261_i32 = arith.constant -2073254261 : i32
    %28 = vector.broadcast %c-2073254261_i32 : i32 to vector<16x128xi32>
    %29 = arith.muli %27, %28 : vector<16x128xi32>
    %c16_i32_8 = arith.constant 16 : i32
    %30 = vector.broadcast %c16_i32_8 : i32 to vector<16x128xi32>
    %31 = arith.shrui %29, %30 : vector<16x128xi32>
    %32 = arith.xori %29, %31 : vector<16x128xi32>
    %c429496729_i32 = arith.constant 429496729 : i32
    %33 = vector.broadcast %c429496729_i32 : i32 to vector<16x128xi32>
    %34 = arith.cmpi uge, %32, %33 : vector<16x128xi32>
    %cst_9 = arith.constant 0.000000e+00 : f32
    %35 = vector.broadcast %cst_9 : f32 to vector<16x128xf32>
    %36 = arith.select %34, %7, %35 : vector<16x128xi1>, vector<16x128xf32>
    %cst_10 = arith.constant dense<0.000000e+00> : vector<128xf32>
    %37 = vector.multi_reduction <add>, %36, %cst_10 [0] : vector<16x128xf32> to vector<128xf32>
    %38 = vector.shape_cast %37 : vector<128xf32> to vector<1x128xf32>
    %39 = arith.mulf %36, %36 : vector<16x128xf32>
    %cst_11 = arith.constant dense<0.000000e+00> : vector<128xf32>
    %40 = vector.multi_reduction <add>, %39, %cst_11 [0] : vector<16x128xf32> to vector<128xf32>
    %41 = vector.shape_cast %40 : vector<128xf32> to vector<1x128xf32>
    %cst_12 = arith.constant 6.250000e-02 : f32
    %42 = vector.broadcast %cst_12 : f32 to vector<1x128xf32>
    %43 = arith.mulf %38, %42 : vector<1x128xf32>
    %cst_13 = arith.constant 6.250000e-02 : f32
    %44 = vector.broadcast %cst_13 : f32 to vector<1x128xf32>
    %45 = arith.mulf %41, %44 : vector<1x128xf32>
    %46 = arith.mulf %43, %43 : vector<1x128xf32>
    %47 = arith.subf %45, %46 : vector<1x128xf32>
    %cst_14 = arith.constant 0.000000e+00 : f32
    %48 = vector.broadcast %cst_14 : f32 to vector<1x128xf32>
    %49 = arith.maximumf %47, %48 : vector<1x128xf32>
    %c0_15 = arith.constant 0 : index
    %c0_16 = arith.constant 0 : index
    %50 = vector.load %arg5[%c0_15, %c0_16] : memref<1x128xf32, #tpu.memory_space<vmem>>, vector<1x128xf32>
    %cst_17 = arith.constant 9.99999974E-6 : f32
    %51 = vector.broadcast %cst_17 : f32 to vector<1x128xf32>
    %52 = arith.addf %49, %51 : vector<1x128xf32>
    %53 = math.rsqrt %52 : vector<1x128xf32>
    %54 = arith.mulf %50, %53 : vector<1x128xf32>
    %c0_18 = arith.constant 0 : index
    %c0_19 = arith.constant 0 : index
    %55 = vector.load %arg6[%c0_18, %c0_19] : memref<1x128xf32, #tpu.memory_space<vmem>>, vector<1x128xf32>
    %56 = arith.mulf %43, %54 : vector<1x128xf32>
    %57 = arith.subf %55, %56 : vector<1x128xf32>
    %58 = vector.broadcast %54 : vector<1x128xf32> to vector<16x128xf32>
    %59 = arith.mulf %36, %58 : vector<16x128xf32>
    %60 = vector.broadcast %57 : vector<1x128xf32> to vector<16x128xf32>
    %61 = arith.addf %59, %60 : vector<16x128xf32>
    %c0_20 = arith.constant 0 : index
    %c0_21 = arith.constant 0 : index
    %62 = vector.load %arg7[%c0_20, %c0_21] : memref<16x128xf32, #tpu.memory_space<vmem>>, vector<16x128xf32>
    tpu.vector_store %arg7[%c0_20, %c0_21], %61 {strides = array<i32>} : memref<16x128xf32, #tpu.memory_space<vmem>>, vector<16x128xf32>,
    return
  }
  func.func @transform_0(%arg0: i32) -> i32 {
    %c0_i32 = arith.constant 0 : i32
    %c0_i32_0 = arith.constant 0 : i32
    return %c0_i32 : i32
  }
  func.func @transform_1(%arg0: i32) -> (i32, i32) {
    %c0_i32 = arith.constant 0 : i32
    %c0_i32_0 = arith.constant 0 : i32
    %c0_i32_1 = arith.constant 0 : i32
    return %c0_i32, %c0_i32_0 : i32, i32
  }
  func.func @transform_2(%arg0: i32) -> (i32, i32) {
    %c0_i32 = arith.constant 0 : i32
    %c0_i32_0 = arith.constant 0 : i32
    return %arg0, %c0_i32 : i32, i32
  }
  func.func @transform_3(%arg0: i32) -> (i32, i32) {
    %c0_i32 = arith.constant 0 : i32
    %c0_i32_0 = arith.constant 0 : i32
    return %c0_i32, %arg0 : i32, i32
  }
  func.func @transform_4(%arg0: i32) -> (i32, i32) {
    %c0_i32 = arith.constant 0 : i32
    %c0_i32_0 = arith.constant 0 : i32
    return %c0_i32, %arg0 : i32, i32
  }
  func.func @transform_5(%arg0: i32) -> (i32, i32) {
    %c0_i32 = arith.constant 0 : i32
    %c0_i32_0 = arith.constant 0 : i32
    return %c0_i32, %arg0 : i32, i32
  }
  func.func @transform_6(%arg0: i32) -> (i32, i32) {
    %c0_i32 = arith.constant 0 : i32
    %c0_i32_0 = arith.constant 0 : i32
    return %c0_i32, %arg0 : i32, i32
  }
}

</mosaic_0001>

<llo_original>
// kernel: tpu_custom_call.1
$region0: #{tpu_custom_call.1}
  #allocation0 [shape = 'u32[]', space=smem, size = 0x4, offset = 0x4, fixed_abs, tag = 'smem constant byte address 0x4 - core index']
  #allocation1 [shape = 'u32[144,128]{1,0:T(1,128)}', space=vmem, size = 0x12000, scoped, tag = 'internal scratch']
  #allocation2 [shape = 's32[1]{0:T(128)S(6)}', space=smem, size = 0x200, scoped, tag = 'scoped memory for tpu_custom_call.1']
  %s0 = inlined_call_operand.<no memory space> [shape: s32[1], index: 0, kind: input, shape index: {}]
  %s1 = inlined_call_operand.vmem [shape: f32[16,64], index: 1, kind: input, shape index: {}]
  %s2 = inlined_call_operand.vmem [shape: f32[256,64], index: 2, kind: input, shape index: {}]
  %s3 = inlined_call_operand.vmem [shape: f32[1,256], index: 3, kind: input, shape index: {}]
  %s4 = inlined_call_operand.vmem [shape: f32[1,256], index: 4, kind: input, shape index: {}]
  %s5 = inlined_call_operand.vmem [shape: f32[1,256], index: 5, kind: input, shape index: {}]
  %s6 = inlined_call_operand.hbm [shape: f32[16,256], index: 6, kind: output, shape index: {}]
  %s7 = sld [smem:[#allocation0]]
  $region57: #{tpu_custom_call.1} parent=0
    _
  %s9 = ssub.s32 1, %s7
  %s10 = scalar_select 0, %s9, %s7
  %11 = sst [smem:[#allocation2]] %s0
  $region1: #{tpu_custom_call.1} parent=0
    #allocation3 [shape = 'u8[16384]{0}', space=vmem, size = 0x4000, scoped, tag = 'output window, operand 0']
    #allocation4 [shape = 's32[2]{0}', space=sflag, size = 0x8, scoped, tag = 'scoped memory for tpu_custom_call.1']
    %12 = vsyncpa [#allocation4], 0
    %s13 = scalar_lea.sflag [#allocation4], 1
    %14 = vsyncpa %s13, 0
    loop: start=0, step=1, limit=4
    $region2: #{tpu_custom_call.1} parent=1 // loop_pre_header
      _
    $region3: #{tpu_custom_call.1} parent=1 // loop_header
      %s16 = sphi 0, %s20
      %p17 = scmp.ge.s32.totalorder %s16, 4
      %s24 = sphi 0, %s24
      %s26 = sphi 0, %s24
      %s27 = sphi 0, %s26
      %s41 = sphi 0, %s27
      %s45 = sphi 0, %s45
      %s47 = sphi 0, %s45
      %s48 = sphi 0, %s47
      %s62 = sphi 0, %s48
      %s68 = sphi 0, %s70
      %s71 = sphi 0, %s68
      %s72 = sphi 0, %s71
      %s88 = sphi 0, %s72
      %s94 = sphi 0, %s96
      %s97 = sphi 0, %s94
      %s98 = sphi 0, %s97
      %s114 = sphi 0, %s98
      %s120 = sphi 0, %s122
      %s123 = sphi 0, %s120
      %s124 = sphi 0, %s123
      %s140 = sphi 0, %s124
      %s146 = sphi 0, %s148
      %s149 = sphi 0, %s146
      %s150 = sphi 0, %s149
      %s166 = sphi 0, %s150
      %s172 = sphi 0, %s174
      %s175 = sphi 0, %s172
      %s176 = sphi 0, %s175
      %s192 = sphi 0, %s176
    $region4: #{tpu_custom_call.1} parent=1 // loop_header_branch
      %19 = sbr.rel (%p17) target = $region8
    $region5: #{tpu_custom_call.1} parent=1 // loop_body
      %s21 = ssub.s32 %s16, 1
      %s22 = ssub.s32 %s16, 2
      %s23 = sadd.s32 %s16, 1
      %s25 = sadd.s32 %s24, 1
      %p28 = scmp.eq.s32.totalorder %s16, 1
      %p29 = scmp.ne.s32.totalorder %s24, %s26
      %p30 = scmp.eq.s32.totalorder %s16, 0
      %p31 = por %p29, %p30
      %p32 = scmp.ne.s32.totalorder %s24, %s26
      %p33 = scmp.eq.s32.totalorder %s21, 1
      %p34 = por %p32, %p33
      %p35 = scmp.ne.s32.totalorder %s26, %s27
      %p36 = scmp.eq.s32.totalorder %s21, 0
      %p37 = por %p35, %p36
      %p38 = scmp.ne.s32.totalorder %s26, %s27
      %p39 = scmp.eq.s32.totalorder %s22, 1
      %p40 = por %p38, %p39
      %p42 = scmp.ne.s32.totalorder %s27, %s41
      %p43 = scmp.eq.s32.totalorder %s22, 0
      %p44 = por %p42, %p43
      %s46 = sadd.s32 %s45, 1
      %p49 = scmp.eq.s32.totalorder %s16, 1
      %p50 = scmp.ne.s32.totalorder %s45, %s47
      %p51 = scmp.eq.s32.totalorder %s16, 0
      %p52 = por %p50, %p51
      %p53 = scmp.ne.s32.totalorder %s45, %s47
      %p54 = scmp.eq.s32.totalorder %s21, 1
      %p55 = por %p53, %p54
      %p56 = scmp.ne.s32.totalorder %s47, %s48
      %p57 = scmp.eq.s32.totalorder %s21, 0
      %p58 = por %p56, %p57
      %p59 = scmp.ne.s32.totalorder %s47, %s48
      %p60 = scmp.eq.s32.totalorder %s22, 1
      %p61 = por %p59, %p60
      %p63 = scmp.ne.s32.totalorder %s48, %s62
      %p64 = scmp.eq.s32.totalorder %s22, 0
      %p65 = por %p63, %p64
      %s66 = ssub.s32 %s16, %s23
      %p67 = scmp.eq.s32.totalorder %s66, 0
      %s69 = sadd.s32 %s68, 1
      %s70 = scalar_select %p67, %s68, %s69
      %p73 = pneg %p67
      %p74 = scmp.eq.s32.totalorder %s16, 1
      %p75 = por %p73, %p74
      %p76 = scmp.ne.s32.totalorder %s68, %s71
      %p77 = scmp.eq.s32.totalorder %s16, 0
      %p78 = por %p76, %p77
      %p79 = scmp.ne.s32.totalorder %s68, %s71
      %p80 = scmp.eq.s32.totalorder %s21, 1
      %p81 = por %p79, %p80
      %p82 = scmp.ne.s32.totalorder %s71, %s72
      %p83 = scmp.eq.s32.totalorder %s21, 0
      %p84 = por %p82, %p83
      %p85 = scmp.ne.s32.totalorder %s71, %s72
      %p86 = scmp.eq.s32.totalorder %s22, 1
      %p87 = por %p85, %p86
      %p89 = scmp.ne.s32.totalorder %s72, %s88
      %p90 = scmp.eq.s32.totalorder %s22, 0
      %p91 = por %p89, %p90
      %s92 = ssub.s32 %s16, %s23
      %p93 = scmp.eq.s32.totalorder %s92, 0
      %s95 = sadd.s32 %s94, 1
      %s96 = scalar_select %p93, %s94, %s95
      %p99 = pneg %p93
      %p100 = scmp.eq.s32.totalorder %s16, 1
      %p101 = por %p99, %p100
      %p102 = scmp.ne.s32.totalorder %s94, %s97
      %p103 = scmp.eq.s32.totalorder %s16, 0
      %p104 = por %p102, %p103
      %p105 = scmp.ne.s32.totalorder %s94, %s97
      %p106 = scmp.eq.s32.totalorder %s21, 1
      %p107 = por %p105, %p106
      %p108 = scmp.ne.s32.totalorder %s97, %s98
      %p109 = scmp.eq.s32.totalorder %s21, 0
      %p110 = por %p108, %p109
      %p111 = scmp.ne.s32.totalorder %s97, %s98
      %p112 = scmp.eq.s32.totalorder %s22, 1
      %p113 = por %p111, %p112
      %p115 = scmp.ne.s32.totalorder %s98, %s114
      %p116 = scmp.eq.s32.totalorder %s22, 0
      %p117 = por %p115, %p116
      %s118 = ssub.s32 %s16, %s23
      %p119 = scmp.eq.s32.totalorder %s118, 0
      %s121 = sadd.s32 %s120, 1
      %s122 = scalar_select %p119, %s120, %s121
      %p125 = pneg %p119
      %p126 = scmp.eq.s32.totalorder %s16, 1
      %p127 = por %p125, %p126
      %p128 = scmp.ne.s32.totalorder %s120, %s123
      %p129 = scmp.eq.s32.totalorder %s16, 0
      %p130 = por %p128, %p129
      %p131 = scmp.ne.s32.totalorder %s120, %s123
      %p132 = scmp.eq.s32.totalorder %s21, 1
      %p133 = por %p131, %p132
      %p134 = scmp.ne.s32.totalorder %s123, %s124
      %p135 = scmp.eq.s32.totalorder %s21, 0
      %p136 = por %p134, %p135
      %p137 = scmp.ne.s32.totalorder %s123, %s124
      %p138 = scmp.eq.s32.totalorder %s22, 1
      %p139 = por %p137, %p138
      %p141 = scmp.ne.s32.totalorder %s124, %s140
      %p142 = scmp.eq.s32.totalorder %s22, 0
      %p143 = por %p141, %p142
      %s144 = ssub.s32 %s16, %s23
      %p145 = scmp.eq.s32.totalorder %s144, 0
      %s147 = sadd.s32 %s146, 1
      %s148 = scalar_select %p145, %s146, %s147
      %p151 = pneg %p145
      %p152 = scmp.eq.s32.totalorder %s16, 1
      %p153 = por %p151, %p152
      %p154 = scmp.ne.s32.totalorder %s146, %s149
      %p155 = scmp.eq.s32.totalorder %s16, 0
      %p156 = por %p154, %p155
      %p157 = scmp.ne.s32.totalorder %s146, %s149
      %p158 = scmp.eq.s32.totalorder %s21, 1
      %p159 = por %p157, %p158
      %p160 = scmp.ne.s32.totalorder %s149, %s150
      %p161 = scmp.eq.s32.totalorder %s21, 0
      %p162 = por %p160, %p161
      %p163 = scmp.ne.s32.totalorder %s149, %s150
      %p164 = scmp.eq.s32.totalorder %s22, 1
      %p165 = por %p163, %p164
      %p167 = scmp.ne.s32.totalorder %s150, %s166
      %p168 = scmp.eq.s32.totalorder %s22, 0
      %p169 = por %p167, %p168
      %s170 = ssub.s32 %s16, %s23
      %p171 = scmp.eq.s32.totalorder %s170, 0
      %s173 = sadd.s32 %s172, 1
      %s174 = scalar_select %p171, %s172, %s173
      %p177 = pneg %p171
      %p178 = scmp.eq.s32.totalorder %s16, 1
      %p179 = por %p177, %p178
      %p180 = scmp.ne.s32.totalorder %s172, %s175
      %p181 = scmp.eq.s32.totalorder %s16, 0
      %p182 = por %p180, %p181
      %p183 = scmp.ne.s32.totalorder %s172, %s175
      %p184 = scmp.eq.s32.totalorder %s21, 1
      %p185 = por %p183, %p184
      %p186 = scmp.ne.s32.totalorder %s175, %s176
      %p187 = scmp.eq.s32.totalorder %s21, 0
      %p188 = por %p186, %p187
      %p189 = scmp.ne.s32.totalorder %s175, %s176
      %p190 = scmp.eq.s32.totalorder %s22, 1
      %p191 = por %p189, %p190
      %p193 = scmp.ne.s32.totalorder %s176, %s192
      %p194 = scmp.eq.s32.totalorder %s22, 0
      %p195 = por %p193, %p194
      %p196 = scmp.le.s32.totalorder 1, %s16
      %p197 = scmp.lt.s32.totalorder %s16, 3
      %p198 = pnand %p196, %p197
      %p199 = pneg %p198
      // Predicated region
      $region9: #{tpu_custom_call.1} parent=5 // pred_check
        _
      $region10: #{tpu_custom_call.1} parent=5 // pred_check_branch
        %201 = sbr.rel (%p198) target = $region12
      $region11: #{tpu_custom_call.1} parent=5 // pred_region
        %s202 = ssub.s32 %s16, 1
        // Predicated region
        $region13: #{tpu_custom_call.1} parent=11 // pred_check
          %p203 = pneg %p37
        $region14: #{tpu_custom_call.1} parent=11 // pred_check_branch
          %205 = sbr.rel (%p203) target = $region16
        $region15: #{tpu_custom_call.1} parent=11 // pred_region
          _
        $region16: #{tpu_custom_call.1} parent=11 // pred_fallthru
          _
        // Predicated region
        $region17: #{tpu_custom_call.1} parent=11 // pred_check
          %p206 = pneg %p58
        $region18: #{tpu_custom_call.1} parent=11 // pred_check_branch
          %208 = sbr.rel (%p206) target = $region20
        $region19: #{tpu_custom_call.1} parent=11 // pred_region
          _
        $region20: #{tpu_custom_call.1} parent=11 // pred_fallthru
          _
      $region12: #{tpu_custom_call.1} parent=5 // pred_fallthru
        _
      %p209 = scmp.lt.s32.totalorder %s16, 2
      // Predicated region
      $region21: #{tpu_custom_call.1} parent=5 // pred_check
        %p210 = pneg %p209
      $region22: #{tpu_custom_call.1} parent=5 // pred_check_branch
        %212 = sbr.rel (%p210) target = $region24
      $region23: #{tpu_custom_call.1} parent=5 // pred_region
        // Predicated region
        $region25: #{tpu_custom_call.1} parent=23 // pred_check
          %p213 = pneg %p78
        $region26: #{tpu_custom_call.1} parent=23 // pred_check_branch
          %215 = sbr.rel (%p213) target = $region28
        $region27: #{tpu_custom_call.1} parent=23 // pred_region
          %s216 = smul.u32 16, %s16
          %p217 = scmp.lt.s32.totalorder %s216, 31
          %s218 = scalar_select %p217, %s216, 31
          %s219 = smul.addr %s218, 8
          %s220 = scalar_lea.vmem %s2, %s219
          %s221 = smul.u32 16, %s16
        $region28: #{tpu_custom_call.1} parent=23 // pred_fallthru
          _
        // Predicated region
        $region29: #{tpu_custom_call.1} parent=23 // pred_check
          %p222 = pneg %p104
        $region30: #{tpu_custom_call.1} parent=23 // pred_check_branch
          %224 = sbr.rel (%p222) target = $region32
        $region31: #{tpu_custom_call.1} parent=23 // pred_region
          %p225 = scmp.lt.s32.totalorder %s16, 1
          %s226 = scalar_select %p225, %s16, 1
          %s227 = scalar_lea.vmem %s3, %s226
        $region32: #{tpu_custom_call.1} parent=23 // pred_fallthru
          _
        // Predicated region
        $region33: #{tpu_custom_call.1} parent=23 // pred_check
          %p228 = pneg %p130
        $region34: #{tpu_custom_call.1} parent=23 // pred_check_branch
          %230 = sbr.rel (%p228) target = $region36
        $region35: #{tpu_custom_call.1} parent=23 // pred_region
          %p231 = scmp.lt.s32.totalorder %s16, 1
          %s232 = scalar_select %p231, %s16, 1
          %s233 = scalar_lea.vmem %s4, %s232
        $region36: #{tpu_custom_call.1} parent=23 // pred_fallthru
          _
        // Predicated region
        $region37: #{tpu_custom_call.1} parent=23 // pred_check
          %p234 = pneg %p156
        $region38: #{tpu_custom_call.1} parent=23 // pred_check_branch
          %236 = sbr.rel (%p234) target = $region40
        $region39: #{tpu_custom_call.1} parent=23 // pred_region
          %p237 = scmp.lt.s32.totalorder %s16, 1
          %s238 = scalar_select %p237, %s16, 1
          %s239 = scalar_lea.vmem %s5, %s238
        $region40: #{tpu_custom_call.1} parent=23 // pred_fallthru
          _
      $region24: #{tpu_custom_call.1} parent=5 // pred_fallthru
        _
      %p240 = scmp.le.s32.totalorder 1, %s16
      %p241 = scmp.lt.s32.totalorder %s16, 3
      %p242 = pnand %p240, %p241
      %p243 = pneg %p242
      // Predicated region
      $region41: #{tpu_custom_call.1} parent=5 // pred_check
        _
      $region42: #{tpu_custom_call.1} parent=5 // pred_check_branch
        %245 = sbr.rel (%p242) target = $region44
      $region43: #{tpu_custom_call.1} parent=5 // pred_region
        %s246 = ssub.s32 %s16, 1
        %p247 = pneg %p37
        %p248 = pneg %p34
        %p249 = pneg %p58
        %p250 = pneg %p55
        %s251 = smul.u32 16, %s21
        %p252 = scmp.lt.s32.totalorder %s251, 31
        %s253 = scalar_select %p252, %s251, 31
        %s254 = smul.addr %s253, 8
        %s255 = scalar_lea.vmem %s2, %s254
        %p256 = pneg %p84
        %p257 = pneg %p81
        %p258 = scmp.lt.s32.totalorder %s21, 1
        %s259 = scalar_select %p258, %s21, 1
        %s260 = scalar_lea.vmem %s3, %s259
        %p261 = pneg %p110
        %p262 = pneg %p107
        %p263 = scmp.lt.s32.totalorder %s21, 1
        %s264 = scalar_select %p263, %s21, 1
        %s265 = scalar_lea.vmem %s4, %s264
        %p266 = pneg %p136
        %p267 = pneg %p133
        %p268 = scmp.lt.s32.totalorder %s21, 1
        %s269 = scalar_select %p268, %s21, 1
        %s270 = scalar_lea.vmem %s5, %s269
        %p271 = pneg %p162
        %p272 = pneg %p159
        %p273 = pneg %p188
        %p274 = pneg %p185
        %s275 = sand.u32 %s175, 1
        %s276 = scalar_lea.sflag [#allocation4], %s275
        %s277 = sand.u32 %s175, 1
        %s278 = smul.addr %s277, 16
        %s279 = scalar_lea.vmem [#allocation3], %s278
        %s280 = smul.u32 16, %s21
        %p281 = scmp.lt.s32.totalorder %s280, 31
        %s282 = scalar_select %p281, %s280, 31
        %s283 = smul.addr %s282, 8
        %s284 = scalar_lea.vmem %s2, %s283
        %s285 = smul.u32 16, %s21
        %p286 = scmp.lt.s32.totalorder %s21, 1
        %s287 = scalar_select %p286, %s21, 1
        %s288 = scalar_lea.vmem %s3, %s287
        %p289 = scmp.lt.s32.totalorder %s21, 1
        %s290 = scalar_select %p289, %s21, 1
        %s291 = scalar_lea.vmem %s4, %s290
        %p292 = scmp.lt.s32.totalorder %s21, 1
        %s293 = scalar_select %p292, %s21, 1
        %s294 = scalar_lea.vmem %s5, %s293
        %v295 = vld [vmem:[%s1] sm:$0xff]
        %v296 = vld [vmem:[%s1 + $0x8] sm:$0xff]
        %v297 = vld [vmem:[%s284] sm:$0xff]
        %v298 = vld [vmem:[%s284 + $0x8] sm:$0xff]
        %v299 = vld [vmem:[%s284 + $0x10] sm:$0xff]
        %v300 = vld [vmem:[%s284 + $0x18] sm:$0xff]
        %v301 = vld [vmem:[%s284 + $0x20] sm:$0xff]
        %v302 = vld [vmem:[%s284 + $0x28] sm:$0xff]
        %v303 = vld [vmem:[%s284 + $0x30] sm:$0xff]
        %v304 = vld [vmem:[%s284 + $0x38] sm:$0xff]
        %v305 = vld [vmem:[%s284 + $0x40] sm:$0xff]
        %v306 = vld [vmem:[%s284 + $0x48] sm:$0xff]
        %v307 = vld [vmem:[%s284 + $0x50] sm:$0xff]
        %v308 = vld [vmem:[%s284 + $0x58] sm:$0xff]
        %v309 = vld [vmem:[%s284 + $0x60] sm:$0xff]
        %v310 = vld [vmem:[%s284 + $0x68] sm:$0xff]
        %v311 = vld [vmem:[%s284 + $0x70] sm:$0xff]
        %v312 = vld [vmem:[%s284 + $0x78] sm:$0xff]
        %v313 = vld [vmem:[%s288] sm:$0x1]
        %v315 = vlaneseq
        %v316 = vshrl.u32 %v315, 7
        %v317 = vsub.s32 0, %v316
        %v318 = vrot.slane %v313, %v317
        %vm320 = vcmask 523264
        %v322 = vsel %vm320, %v295, 0
        %v325 = vsel %vm320, %v296, 0
        %v328 = vsel %vm320, %v297, 0
        %v331 = vsel %vm320, %v298, 0
        %v334 = vsel %vm320, %v299, 0
        %v337 = vsel %vm320, %v300, 0
        %v340 = vsel %vm320, %v301, 0
        %v343 = vsel %vm320, %v302, 0
        %v346 = vsel %vm320, %v303, 0
        %v349 = vsel %vm320, %v304, 0
        %v352 = vsel %vm320, %v305, 0
        %v355 = vsel %vm320, %v306, 0
        %v358 = vsel %vm320, %v307, 0
        %v361 = vsel %vm320, %v308, 0
        %v364 = vsel %vm320, %v309, 0
        %v367 = vsel %vm320, %v310, 0
        %v370 = vsel %vm320, %v311, 0
        %v373 = vsel %vm320, %v312, 0
        %375 = vmatprep.subr.mxu0 0.0
        %376 = vmatpush1.xpose.msra.mxu0 %v373
        %377 = vmatprep.subr.mxu0 0.0
        %378 = vmatpush1.xpose.msra.mxu0 %v370
        %379 = vmatprep.subr.mxu0 0.0
        %380 = vmatpush1.xpose.msra.mxu0 %v367
        %381 = vmatprep.subr.mxu0 0.0
        %382 = vmatpush1.xpose.msra.mxu0 %v364
        %383 = vmatprep.subr.mxu0 0.0
        %384 = vmatpush1.xpose.msra.mxu0 %v361
        %385 = vmatprep.subr.mxu0 0.0
        %386 = vmatpush1.xpose.msra.mxu0 %v358
        %387 = vmatprep.subr.mxu0 0.0
        %388 = vmatpush1.xpose.msra.mxu0 %v355
        %389 = vmatprep.subr.mxu0 0.0
        %390 = vmatpush1.xpose.msra.mxu0 %v352
        %391 = vmatprep.subr.mxu0 0.0
        %392 = vmatpush1.xpose.msra.mxu0 %v349
        %393 = vmatprep.subr.mxu0 0.0
        %394 = vmatpush1.xpose.msra.mxu0 %v346
        %395 = vmatprep.subr.mxu0 0.0
        %396 = vmatpush1.xpose.msra.mxu0 %v343
        %397 = vmatprep.subr.mxu0 0.0
        %398 = vmatpush1.xpose.msra.mxu0 %v340
        %399 = vmatprep.subr.mxu0 0.0
        %400 = vmatpush1.xpose.msra.mxu0 %v337
        %401 = vmatprep.subr.mxu0 0.0
        %402 = vmatpush1.xpose.msra.mxu0 %v334
        %403 = vmatprep.subr.mxu0 0.0
        %404 = vmatpush1.xpose.msra.mxu0 %v331
        %405 = vmatprep.subr.mxu0 0.0
        %406 = vmatpush1.xpose.msra.mxu0 %v328
        %407 = vmatprep.subr.mxu0 0.0
        %408 = vmatpush2.xpose.msra.mxu0 0.0
        %409 = vmatprep.subr.mxu0 0.0
        %410 = vmatpush2.xpose.msra.mxu0 0.0
        %411 = vmatprep.subr.mxu0 0.0
        %412 = vmatpush2.xpose.msra.mxu0 0.0
        %413 = vmatprep.subr.mxu0 0.0
        %414 = vmatpush2.xpose.msra.mxu0 0.0
        %415 = vmatprep.subr.mxu0 0.0
        %416 = vmatpush2.xpose.msra.mxu0 0.0
        %417 = vmatprep.subr.mxu0 0.0
        %418 = vmatpush2.xpose.msra.mxu0 0.0
        %419 = vmatprep.subr.mxu0 0.0
        %420 = vmatpush2.xpose.msra.mxu0 0.0
        %421 = vmatprep.subr.mxu0 0.0
        %422 = vmatpush2.xpose.msra.mxu0 0.0
        %423 = vmatprep.subr.mxu0 0.0
        %424 = vmatpush2.xpose.msra.mxu0 0.0
        %425 = vmatprep.subr.mxu0 0.0
        %426 = vmatpush2.xpose.msra.mxu0 0.0
        %427 = vmatprep.subr.mxu0 0.0
        %428 = vmatpush2.xpose.msra.mxu0 0.0
        %429 = vmatprep.subr.mxu0 0.0
        %430 = vmatpush2.xpose.msra.mxu0 0.0
        %431 = vmatprep.subr.mxu0 0.0
        %432 = vmatpush2.xpose.msra.mxu0 0.0
        %433 = vmatprep.subr.mxu0 0.0
        %434 = vmatpush2.xpose.msra.mxu0 0.0
        %435 = vmatprep.subr.mxu0 0.0
        %436 = vmatpush2.xpose.msra.mxu0 0.0
        %437 = vmatprep.subr.mxu0 0.0
        %438 = vmatpush2.xpose.msra.mxu0 0.0
        %439 = vmatprep.mubr.f32.mxu0 0.0
        %440 = vmatmul.mubr.f32.gmra.mxu0 %v322
        %v441 = vpop.f32.mrf.mxu0
        %v442 = vadd.f32 %v318, %v441
        %v443 = vpop.f32.mrf.mxu0
        %444 = vmatprep.mubr.f32.mxu0 0.0
        %445 = vmatmul.mubr.f32.gmra.mxu0 %v325
        %v446 = vpop.f32.mrf.mxu0
        %v447 = vadd.f32 %v318, %v446
        %v448 = vpop.f32.mrf.mxu0
        %449 = vdwg.mxu0
        %v450 = vmax.f32 %v442, 0.0
        %v451 = vmax.f32 %v447, 0.0
        %s452 = sld [smem:[#allocation2]]
        %v453 = vlaneseq
        %v454 = vshrl.u32 %v453, 7
        %v455 = vadd.s32 %v454, 8
        %v456 = vlaneseq
        %v457 = vand.u32 %v456, 127
        %s458 = smul.u32 %s21, 128
        %v459 = vstv %s458
        %v460 = vadd.s32 %v457, %v459
        %v461 = vmul.u32 %v460, 16
        %v462 = vadd.s32 %v461, %v454
        %v463 = vadd.s32 %v461, %v455
        %s464 = smul.u32 %s452, 2654435769
        %v465 = vstv %s464
        %v466 = vadd.s32 %v462, %v465
        %v467 = vadd.s32 %v463, %v465
        %v468 = vshrl.u32 %v466, 16
        %v469 = vshrl.u32 %v467, 16
        %v470 = vxor.u32 %v466, %v468
        %v471 = vxor.u32 %v467, %v469
        %v472 = vmul.u32 %v470, 2146121005
        %v473 = vmul.u32 %v471, 2146121005
        %v474 = vshrl.u32 %v472, 15
        %v475 = vshrl.u32 %v473, 15
        %v476 = vxor.u32 %v472, %v474
        %v477 = vxor.u32 %v473, %v475
        %v478 = vmul.u32 %v476, 2221713035
        %v479 = vmul.u32 %v477, 2221713035
        %v480 = vshrl.u32 %v478, 16
        %v481 = vshrl.u32 %v479, 16
        %v482 = vxor.u32 %v478, %v480
        %v483 = vxor.u32 %v479, %v481
        %vm484 = vcmp.ge.u32.totalorder %v482, 429496729
        %vm485 = vcmp.ge.u32.totalorder %v483, 429496729
        %v486 = vsel %vm484, %v450, 0.0
        %v487 = vsel %vm485, %v451, 0.0
        %v488 = vadd.f32 %v486, %v487
        %v489 = vrot.slane %v488, 4
        %v490 = vadd.f32 %v488, %v489
        %v491 = vrot.slane %v490, 2
        %v492 = vadd.f32 %v490, %v491
        %v493 = vrot.slane %v492, 1
        %v494 = vadd.f32 %v492, %v493
        %v495 = vmul.f32 %v486, %v486
        %v496 = vmul.f32 %v487, %v487
        %v497 = vadd.f32 %v495, %v496
        %v498 = vrot.slane %v497, 4
        %v499 = vadd.f32 %v497, %v498
        %v500 = vrot.slane %v499, 2
        %v501 = vadd.f32 %v499, %v500
        %v502 = vrot.slane %v501, 1
        %v503 = vadd.f32 %v501, %v502
        %v504 = vmul.f32 %v494, 0.0625
        %v505 = vmul.f32 %v503, 0.0625
        %v506 = vmul.f32 %v504, %v504
        %v507 = vsub.f32 %v505, %v506
        %v508 = vmax.f32 %v507, 0.0
        %v509 = vld [vmem:[%s291] sm:$0x1]
        %v510 = vadd.f32 %v508, 1e-05
        %v511 = vrsqrt.pop %v510
        %v512 = vmul.f32 %v509, %v511
        %v513 = vld [vmem:[%s294] sm:$0x1]
        %v514 = vmul.f32 %v504, %v512
        %v515 = vsub.f32 %v513, %v514
        %v517 = vlaneseq
        %v518 = vshrl.u32 %v517, 7
        %v519 = vsub.s32 0, %v518
        %v520 = vrot.slane %v512, %v519
        %v522 = vmul.f32 %v486, %v520
        %v523 = vmul.f32 %v487, %v520
        %v525 = vlaneseq
        %v526 = vshrl.u32 %v525, 7
        %v527 = vsub.s32 0, %v526
        %v528 = vrot.slane %v515, %v527
        %v530 = vadd.f32 %v522, %v528
        %v531 = vadd.f32 %v523, %v528
        %532 = vst [vmem:[%s279] sm:$0xff] %v530
        %533 = vst [vmem:[%s279 + $0x8] sm:$0xff] %v531
        %s534 = sand.u32 %s175, 1
        %s535 = scalar_lea.sflag [#allocation4], %s534
        %s536 = sand.u32 %s175, 1
        %s537 = smul.addr %s536, 16
        %s538 = scalar_lea.vmem [#allocation3], %s537
        // Predicated region
        $region45: #{tpu_custom_call.1} parent=43 // pred_check
          %p539 = pneg %p185
        $region46: #{tpu_custom_call.1} parent=43 // pred_check_branch
          %541 = sbr.rel (%p539) target = $region48
        $region47: #{tpu_custom_call.1} parent=43 // pred_region
          %s543 = ssub.s32 256, 256
          %544 = vsyncadd %s535, %s543
          %s545 = smul.addr %s21, 128
          %s546 = scalar_lea.hbm %s6, %s545
          %s547 = sshll.u32 %s538, 4
          %s548 = int_to_ptr.vmem [resolvable:$true] %s547
          %553 = dma.vmem_to_hbm [thread:$0]  %s548, 256, %s546, %s535, 128, 256, 8
        $region48: #{tpu_custom_call.1} parent=43 // pred_fallthru
          _
      $region44: #{tpu_custom_call.1} parent=5 // pred_fallthru
        _
      %p554 = scmp.le.s32.totalorder 2, %s16
      // Predicated region
      $region49: #{tpu_custom_call.1} parent=5 // pred_check
        %p555 = pneg %p554
      $region50: #{tpu_custom_call.1} parent=5 // pred_check_branch
        %557 = sbr.rel (%p555) target = $region52
      $region51: #{tpu_custom_call.1} parent=5 // pred_region
        %s558 = ssub.s32 %s16, 2
        // Predicated region
        $region53: #{tpu_custom_call.1} parent=51 // pred_check
          %p559 = pneg %p191
        $region54: #{tpu_custom_call.1} parent=51 // pred_check_branch
          %561 = sbr.rel (%p559) target = $region56
        $region55: #{tpu_custom_call.1} parent=51 // pred_region
          %s562 = sand.u32 %s176, 1
          %s563 = scalar_lea.sflag [#allocation4], %s562
          %s564 = sand.u32 %s176, 1
          %s565 = smul.addr %s564, 16
          %s566 = scalar_lea.vmem [#allocation3], %s565
          %567 = dma.done %s563, 256
        $region56: #{tpu_custom_call.1} parent=51 // pred_fallthru
          _
      $region52: #{tpu_custom_call.1} parent=5 // pred_fallthru
        _
    $region6: #{tpu_custom_call.1} parent=1 // loop_footer
      %s20 = sadd.s32 1, %s16
    $region7: #{tpu_custom_call.1} parent=1 // loop_footer_branch
      %15 = sbr.rel target = $region3
    $region8: #{tpu_custom_call.1} parent=1 // loop_exit
      _
    %568 = vsyncpa [#allocation4], 1
    %s569 = scalar_lea.sflag [#allocation4], 1
    %570 = vsyncpa %s569, 1

</llo_original>
